<compile_context>
chip_gen: v7x
topology: tpu7x:2x2x1
jax: 0.10.0
libtpu: 0.0.40
codegen_flags: <defaults>
</compile_context>

<pallas_src>
import functools
import math

import jax
import jax.numpy as jnp
import numpy as np
from jax import lax
from jax.experimental import pallas as pl
from jax.experimental.pallas import tpu as pltpu

TEMPERATURE = 0.1


def _cluster_loss_kernel(ci_ref, cj_ref, out_ref,
                         gram_acc, colsum_acc, sqsum_acc, pos_acc,
                         *, class_num, temperature, mxu_dtype):
    K = class_num
    N = 2 * K
    inv_temp = 1.0 / temperature
    mxu_is_f32 = jnp.dtype(mxu_dtype) == jnp.dtype(jnp.float32)

    step = pl.program_id(0)
    last = pl.num_programs(0) - 1

    @pl.when(step == 0)
    def _init():
        gram_acc[...] = jnp.zeros_like(gram_acc)
        colsum_acc[...] = jnp.zeros_like(colsum_acc)
        sqsum_acc[...] = jnp.zeros_like(sqsum_acc)
        pos_acc[...] = jnp.zeros_like(pos_acc)

    # ---------------- hot loop: one pass over each (TB, K) tile ----------------
    ci = ci_ref[...]                                          # (TB, K) float32
    cj = cj_ref[...]                                          # (TB, K) float32

    # raw column sums (entropy term) and raw positive dot -- sublane reductions
    colsum_acc[...] += jnp.concatenate(
        [jnp.sum(ci, axis=0, keepdims=True),
         jnp.sum(cj, axis=0, keepdims=True)], axis=1)         # (1, N)
    pos_acc[...] += jnp.sum(ci * cj, axis=0, keepdims=True)   # (1, K)

    # single lane concat of the MXU operands (cast first: half the relayout
    # bytes on the bf16 path)
    c_m = jnp.concatenate(
        [ci.astype(mxu_dtype), cj.astype(mxu_dtype)], axis=1)  # (TB, N)

    # unnormalized gram accumulate on the MXU; the batch axis is contracted
    # directly -- any per-tile relayout Mosaic inserts for the dim-0
    # contraction is small and hidden under the next tile's DMA.
    gram_acc[...] += lax.dot_general(
        c_m, c_m, dimension_numbers=(((0,), (0,)), ((), ())),
        preferred_element_type=jnp.float32)                    # (N, N)

    # column sum-of-squares of the MXU-dtype values, so the epilogue's diagonal
    # reconstruction matches the gram's diagonal exactly (bf16 path included).
    cf = c_m if mxu_is_f32 else c_m.astype(jnp.float32)
    sqsum_acc[...] += jnp.sum(cf * cf, axis=0, keepdims=True)  # (1, N)

    # ---------------- epilogue: O(N^2), runs once ----------------
    @pl.when(step == last)
    def _finalize():
        gram = gram_acc[...]                                   # (N, N)
        colsum = colsum_acc[...]                               # (1, N)
        sqsum = sqsum_acc[...]                                 # (1, N)
        pos_u = pos_acc[...]                                   # (1, K)

        # negative-entropy regularizer (ne_i + ne_j)
        p_i = colsum[:, :K]
        p_i = p_i / (jnp.sum(p_i) + 1e-8)
        ne_i = math.log(K) + jnp.sum(p_i * jnp.log(p_i + 1e-8))
        p_j = colsum[:, K:]
        p_j = p_j / (jnp.sum(p_j) + 1e-8)
        ne_j = math.log(K) + jnp.sum(p_j * jnp.log(p_j + 1e-8))

        # per-column cosine normalization with 1/temperature folded in
        s = lax.rsqrt(jnp.maximum(sqsum, 1e-16)) * math.sqrt(inv_temp)  # (1, N)

        # sim[r, c] = G[c, r] * s[r] * s[c]  (scaled cosine similarity); the
        # transpose trick keeps every vector row-oriented (no (N,1) temps).
        sim = jnp.transpose(gram * s) * s                      # (N, N)

        # diagonal (~= 1/T) reconstructed consistently with the gram diagonal,
        # and the positive-pair logits, both as (1, N) rows.
        diag_row = sqsum * s * s                               # (1, N)
        pos_k = pos_u * s[:, :K] * s[:, K:]                    # (1, K)
        pos_row = jnp.concatenate([pos_k, pos_k], axis=1)      # (1, N)

        # Row-wise logsumexp of z = sim with its diagonal replaced by pos,
        # done as per-column stats of the (symmetric) sim so every vector stays
        # lane-resident (1, N).  Per-column max shift is safe for any T.
        m = jnp.max(sim, axis=0, keepdims=True)                        # (1, N)
        esum = jnp.sum(jnp.exp(sim - m), axis=0, keepdims=True)        # (1, N)
        neg_sum = jnp.maximum(esum - jnp.exp(diag_row - m), 0.0)
        lse = m + jnp.log(neg_sum + jnp.exp(pos_row - m))              # (1, N)

        # CrossEntropyLoss(reduction='sum')(log_softmax(z), 0) / N
        ce = (jnp.sum(lse) - jnp.sum(pos_row)) / N
        out_ref[0, 0] = ce + ne_i + ne_j

        # TODO(synk): for very large class_num (K >~ 512, N >= 1024) tile this
        # epilogue's exp/logsumexp over row blocks instead of materializing the
        # full (N,N) exp, and raise vmem_limit_bytes accordingly.


def _pick_batch_tile(batch):
    """Largest convenient batch tile; always a legal (8-multiple or full-dim) block."""
    if batch <= 512:
        return batch
    for tb in (512, 256, 128, 64, 32, 16, 8):
        if batch % tb == 0:
            return tb
    return batch  # ragged batch: fall back to a single tile (still correct)


def dynamic_cluster_loss(c_i, c_j, temperature=TEMPERATURE,
                         mxu_dtype=jnp.float32):
    """c_i, c_j: (batch, class_num) cluster assignment probabilities.

    mxu_dtype=jnp.bfloat16 enables the fast MXU path with f32 accumulation on
    ALL TPU generations (v5e/v6e/v7x MXUs are bf16-native); elementwise math
    stays in f32.
    """
    assert c_i.shape == c_j.shape and c_i.ndim == 2
    B, K = c_i.shape
    N = 2 * K
    tb = _pick_batch_tile(B)
    grid = (B // tb,)

    kernel = functools.partial(
        _cluster_loss_kernel, class_num=K,
        temperature=float(temperature), mxu_dtype=mxu_dtype)

    cost = pl.CostEstimate(
        flops=int(2 * B * N * N + 10 * B * N + 8 * N * N),
        transcendentals=int(N * N + 6 * N),
        bytes_accessed=int(2 * B * K * 4 + 4),
    )

    out = pl.pallas_call(
        kernel,
        out_shape=jax.ShapeDtypeStruct((1, 1), jnp.float32),
        grid_spec=pltpu.PrefetchScalarGridSpec(
            num_scalar_prefetch=0,
            grid=grid,
            in_specs=[pl.BlockSpec((tb, K), lambda b: (b, 0)),
                      pl.BlockSpec((tb, K), lambda b: (b, 0))],
            out_specs=pl.BlockSpec(memory_space=pltpu.MemorySpace.SMEM),
            scratch_shapes=[
                pltpu.VMEM((N, N), jnp.float32),   # unnormalized gram
                pltpu.VMEM((1, N), jnp.float32),   # column sums
                pltpu.VMEM((1, N), jnp.float32),   # column sum-of-squares
                pltpu.VMEM((1, K), jnp.float32),   # unnormalized positive dot
            ]),
        compiler_params=pltpu.CompilerParams(
            dimension_semantics=("arbitrary",),
            # Well within the scoped limit on v5e/v6e and safe headroom on
            # v7x's 64 MiB physical VMEM; far above this kernel's needs at
            # realistic class counts / the chosen batch tile.
            vmem_limit_bytes=32 * 1024 * 1024),
        cost_estimate=cost,
    )(c_i.astype(jnp.float32), c_j.astype(jnp.float32))
    return out[0, 0]


def _reference(c_i, c_j, temperature):
    """Faithful numpy transcription of the PyTorch forward (float64)."""
    c_i = np.asarray(c_i, dtype=np.float64)
    c_j = np.asarray(c_j, dtype=np.float64)
    K = c_i.shape[1]
    N = 2 * K

    p_i = c_i.sum(0)
    p_i = p_i / (p_i.sum() + 1e-8)
    ne_i = math.log(K) + (p_i * np.log(p_i + 1e-8)).sum()
    p_j = c_j.sum(0)
    p_j = p_j / (p_j.sum() + 1e-8)
    ne_j = math.log(K) + (p_j * np.log(p_j + 1e-8)).sum()

    c = np.concatenate([c_i.T, c_j.T], axis=0)
    norms = np.linalg.norm(c, axis=1)
    sim = (c @ c.T) / np.maximum(np.outer(norms, norms), 1e-8) / temperature

    pos = np.concatenate([np.diagonal(sim, K), np.diagonal(sim, -K)]).reshape(N, 1)
    neg = sim[~np.eye(N, dtype=bool)].reshape(N, -1)
    logits = np.concatenate([pos, neg], axis=1)

    def log_softmax(x):
        m = x.max(axis=1, keepdims=True)
        return x - m - np.log(np.exp(x - m).sum(axis=1, keepdims=True))

    lp = log_softmax(log_softmax(logits))
    loss = -(lp[:, 0]).sum() / N
    return loss + ne_i + ne_j


if __name__ == "__main__":
    key = jax.random.PRNGKey(0)
    k1, k2 = jax.random.split(key)
    batch, class_num = 8, 16
    c_i = jax.nn.softmax(jax.random.normal(k1, (batch, class_num), jnp.float32), axis=1)
    c_j = jax.nn.softmax(jax.random.normal(k2, (batch, class_num), jnp.float32), axis=1)

    ref = _reference(c_i, c_j, TEMPERATURE)

    # f32 MXU path (default)
    loss = dynamic_cluster_loss(c_i, c_j)
    jax.block_until_ready(loss)
    np.testing.assert_allclose(np.asarray(loss), np.asarray(ref), rtol=1e-3, atol=1e-3)

    # bf16 MXU fast path (recommended on v5e/v6e/v7x): f32 accumulate, looser tol.
    loss_bf16 = dynamic_cluster_loss(c_i, c_j, mxu_dtype=jnp.bfloat16)
    jax.block_until_ready(loss_bf16)
    np.testing.assert_allclose(np.asarray(loss_bf16), np.asarray(ref), rtol=5e-2, atol=5e-2)

    print("KERNEL_OK")
</pallas_src>

<mosaic_0001>
module attributes {stable_mosaic.version = 11 : i64} {
  func.func @_cluster_loss_kernel(%arg0: i32, %arg1: memref<8x16xf32, #tpu.memory_space<vmem>>, %arg2: memref<8x16xf32, #tpu.memory_space<vmem>>, %arg3: memref<1x1xf32, #tpu.memory_space<smem>>, %arg4: memref<32x32xf32, #tpu.memory_space<vmem>>, %arg5: memref<1x32xf32, #tpu.memory_space<vmem>>, %arg6: memref<1x32xf32, #tpu.memory_space<vmem>>, %arg7: memref<1x16xf32, #tpu.memory_space<vmem>>) attributes {dimension_semantics = [#tpu.dimension_semantics<arbitrary>], iteration_bounds = array<i64: 1>, scalar_prefetch = 0 : i64, scratch_operands = 4 : i64, tpu.core_type = #tpu.core_type<tc>, window_params = [{transform_indices = @transform_0, window_bounds = array<i64: 8, 16>}, {transform_indices = @transform_1, window_bounds = array<i64: 8, 16>}, {transform_indices = @transform_2, window_bounds = array<i64: 1, 1>}]} {
    %c0_i32 = arith.constant 0 : i32
    %0 = arith.cmpi eq, %arg0, %c0_i32 : i32
    %1 = arith.extui %0 : i1 to i32
    %c0_i32_0 = arith.constant 0 : i32
    %2 = arith.cmpi ne, %1, %c0_i32_0 : i32
    scf.if %2 {
      %cst_26 = arith.constant 0.000000e+00 : f32
      %33 = vector.broadcast %cst_26 : f32 to vector<32x32xf32>
      %c0_27 = arith.constant 0 : index
      %c0_28 = arith.constant 0 : index
      %34 = vector.load %arg4[%c0_27, %c0_28] : memref<32x32xf32, #tpu.memory_space<vmem>>, vector<32x32xf32>
      tpu.vector_store %arg4[%c0_27, %c0_28], %33 {strides = array<i32>} : memref<32x32xf32, #tpu.memory_space<vmem>>, vector<32x32xf32>,
      %cst_29 = arith.constant 0.000000e+00 : f32
      %35 = vector.broadcast %cst_29 : f32 to vector<1x32xf32>
      %c0_30 = arith.constant 0 : index
      %c0_31 = arith.constant 0 : index
      %36 = vector.load %arg5[%c0_30, %c0_31] : memref<1x32xf32, #tpu.memory_space<vmem>>, vector<1x32xf32>
      tpu.vector_store %arg5[%c0_30, %c0_31], %35 {strides = array<i32>} : memref<1x32xf32, #tpu.memory_space<vmem>>, vector<1x32xf32>,
      %cst_32 = arith.constant 0.000000e+00 : f32
      %37 = vector.broadcast %cst_32 : f32 to vector<1x32xf32>
      %c0_33 = arith.constant 0 : index
      %c0_34 = arith.constant 0 : index
      %38 = vector.load %arg6[%c0_33, %c0_34] : memref<1x32xf32, #tpu.memory_space<vmem>>, vector<1x32xf32>
      tpu.vector_store %arg6[%c0_33, %c0_34], %37 {strides = array<i32>} : memref<1x32xf32, #tpu.memory_space<vmem>>, vector<1x32xf32>,
      %cst_35 = arith.constant 0.000000e+00 : f32
      %39 = vector.broadcast %cst_35 : f32 to vector<1x16xf32>
      %c0_36 = arith.constant 0 : index
      %c0_37 = arith.constant 0 : index
      %40 = vector.load %arg7[%c0_36, %c0_37] : memref<1x16xf32, #tpu.memory_space<vmem>>, vector<1x16xf32>
      tpu.vector_store %arg7[%c0_36, %c0_37], %39 {strides = array<i32>} : memref<1x16xf32, #tpu.memory_space<vmem>>, vector<1x16xf32>,
    } else {
    }
    %c0 = arith.constant 0 : index
    %c0_1 = arith.constant 0 : index
    %3 = vector.load %arg1[%c0, %c0_1] : memref<8x16xf32, #tpu.memory_space<vmem>>, vector<8x16xf32>
    %c0_2 = arith.constant 0 : index
    %c0_3 = arith.constant 0 : index
    %4 = vector.load %arg2[%c0_2, %c0_3] : memref<8x16xf32, #tpu.memory_space<vmem>>, vector<8x16xf32>
    %c0_4 = arith.constant 0 : index
    %c0_5 = arith.constant 0 : index
    %5 = vector.load %arg5[%c0_4, %c0_5] : memref<1x32xf32, #tpu.memory_space<vmem>>, vector<1x32xf32>
    %cst = arith.constant dense<0.000000e+00> : vector<16xf32>
    %6 = vector.multi_reduction <add>, %3, %cst [0] : vector<8x16xf32> to vector<16xf32>
    %7 = vector.shape_cast %6 : vector<16xf32> to vector<1x16xf32>
    %cst_6 = arith.constant dense<0.000000e+00> : vector<16xf32>
    %8 = vector.multi_reduction <add>, %4, %cst_6 [0] : vector<8x16xf32> to vector<16xf32>
    %9 = vector.shape_cast %8 : vector<16xf32> to vector<1x16xf32>
    %10 = tpu.concatenate %7, %9 in 1 : vector<1x16xf32>, vector<1x16xf32> -> vector<1x32xf32>
    %11 = arith.addf %5, %10 : vector<1x32xf32>
    %c0_7 = arith.constant 0 : index
    %c0_8 = arith.constant 0 : index
    %12 = vector.load %arg5[%c0_7, %c0_8] : memref<1x32xf32, #tpu.memory_space<vmem>>, vector<1x32xf32>
    tpu.vector_store %arg5[%c0_7, %c0_8], %11 {strides = array<i32>} : memref<1x32xf32, #tpu.memory_space<vmem>>, vector<1x32xf32>,
    %c0_9 = arith.constant 0 : index
    %c0_10 = arith.constant 0 : index
    %13 = vector.load %arg7[%c0_9, %c0_10] : memref<1x16xf32, #tpu.memory_space<vmem>>, vector<1x16xf32>
    %14 = arith.mulf %3, %4 : vector<8x16xf32>
    %cst_11 = arith.constant dense<0.000000e+00> : vector<16xf32>
    %15 = vector.multi_reduction <add>, %14, %cst_11 [0] : vector<8x16xf32> to vector<16xf32>
    %16 = vector.shape_cast %15 : vector<16xf32> to vector<1x16xf32>
    %17 = arith.addf %13, %16 : vector<1x16xf32>
    %c0_12 = arith.constant 0 : index
    %c0_13 = arith.constant 0 : index
    %18 = vector.load %arg7[%c0_12, %c0_13] : memref<1x16xf32, #tpu.memory_space<vmem>>, vector<1x16xf32>
    tpu.vector_store %arg7[%c0_12, %c0_13], %17 {strides = array<i32>} : memref<1x16xf32, #tpu.memory_space<vmem>>, vector<1x16xf32>,
    %19 = tpu.concatenate %3, %4 in 1 : vector<8x16xf32>, vector<8x16xf32> -> vector<8x32xf32>
    %c0_14 = arith.constant 0 : index
    %c0_15 = arith.constant 0 : index
    %20 = vector.load %arg4[%c0_14, %c0_15] : memref<32x32xf32, #tpu.memory_space<vmem>>, vector<32x32xf32>
    %cst_16 = arith.constant dense<0.000000e+00> : vector<32x32xf32>
    %21 = tpu.matmul %19, %19, %cst_16 {dimension_numbers = #tpu.dot_dimension_numbers<[0], [0], [1], [1], [0, 1, 1, 1], [], []>} : vector<8x32xf32>, vector<8x32xf32>, vector<32x32xf32> -> vector<32x32xf32>
    %22 = arith.addf %20, %21 : vector<32x32xf32>
    %c0_17 = arith.constant 0 : index
    %c0_18 = arith.constant 0 : index
    %23 = vector.load %arg4[%c0_17, %c0_18] : memref<32x32xf32, #tpu.memory_space<vmem>>, vector<32x32xf32>
    tpu.vector_store %arg4[%c0_17, %c0_18], %22 {strides = array<i32>} : memref<32x32xf32, #tpu.memory_space<vmem>>, vector<32x32xf32>,
    %c0_19 = arith.constant 0 : index
    %c0_20 = arith.constant 0 : index
    %24 = vector.load %arg6[%c0_19, %c0_20] : memref<1x32xf32, #tpu.memory_space<vmem>>, vector<1x32xf32>
    %25 = arith.mulf %19, %19 : vector<8x32xf32>
    %cst_21 = arith.constant dense<0.000000e+00> : vector<32xf32>
    %26 = vector.multi_reduction <add>, %25, %cst_21 [0] : vector<8x32xf32> to vector<32xf32>
    %27 = vector.shape_cast %26 : vector<32xf32> to vector<1x32xf32>
    %28 = arith.addf %24, %27 : vector<1x32xf32>
    %c0_22 = arith.constant 0 : index
    %c0_23 = arith.constant 0 : index
    %29 = vector.load %arg6[%c0_22, %c0_23] : memref<1x32xf32, #tpu.memory_space<vmem>>, vector<1x32xf32>
    tpu.vector_store %arg6[%c0_22, %c0_23], %28 {strides = array<i32>} : memref<1x32xf32, #tpu.memory_space<vmem>>, vector<1x32xf32>,
    %c0_i32_24 = arith.constant 0 : i32
    %30 = arith.cmpi eq, %arg0, %c0_i32_24 : i32
    %31 = arith.extui %30 : i1 to i32
    %c0_i32_25 = arith.constant 0 : i32
    %32 = arith.cmpi ne, %31, %c0_i32_25 : i32
    scf.if %32 {
      %c0_26 = arith.constant 0 : index
      %c0_27 = arith.constant 0 : index
      %33 = vector.load %arg4[%c0_26, %c0_27] : memref<32x32xf32, #tpu.memory_space<vmem>>, vector<32x32xf32>
      %c0_28 = arith.constant 0 : index
      %c0_29 = arith.constant 0 : index
      %34 = vector.load %arg5[%c0_28, %c0_29] : memref<1x32xf32, #tpu.memory_space<vmem>>, vector<1x32xf32>
      %c0_30 = arith.constant 0 : index
      %c0_31 = arith.constant 0 : index
      %35 = vector.load %arg6[%c0_30, %c0_31] : memref<1x32xf32, #tpu.memory_space<vmem>>, vector<1x32xf32>
      %c0_32 = arith.constant 0 : index
      %c0_33 = arith.constant 0 : index
      %36 = vector.load %arg7[%c0_32, %c0_33] : memref<1x16xf32, #tpu.memory_space<vmem>>, vector<1x16xf32>
      %37 = vector.extract_strided_slice %34 {offsets = [0, 0], sizes = [1, 16], strides = [1, 1]} : vector<1x32xf32> to vector<1x16xf32>
      %38 = vector.shape_cast %37 : vector<1x16xf32> to vector<1x1x16xf32>
      %cst_34 = arith.constant dense<0.000000e+00> : vector<1xf32>
      %39 = vector.multi_reduction <add>, %38, %cst_34 [1, 2] : vector<1x1x16xf32> to vector<1xf32>
      %40 = vector.shape_cast %39 : vector<1xf32> to vector<1x1x1xf32>
      %41 = vector.extract %40[0, 0, 0] : f32 from vector<1x1x1xf32>
      %cst_35 = arith.constant 9.99999993E-9 : f32
      %42 = arith.addf %41, %cst_35 : f32
      %43 = vector.broadcast %42 : f32 to vector<1x16xf32>
      %44 = arith.divf %37, %43 : vector<1x16xf32>
      %cst_36 = arith.constant 9.99999993E-9 : f32
      %45 = vector.broadcast %cst_36 : f32 to vector<1x16xf32>
      %46 = arith.addf %44, %45 : vector<1x16xf32>
      %47 = math.log %46 : vector<1x16xf32>
      %48 = arith.mulf %44, %47 : vector<1x16xf32>
      %49 = vector.shape_cast %48 : vector<1x16xf32> to vector<1x1x16xf32>
      %cst_37 = arith.constant dense<0.000000e+00> : vector<1xf32>
      %50 = vector.multi_reduction <add>, %49, %cst_37 [1, 2] : vector<1x1x16xf32> to vector<1xf32>
      %51 = vector.shape_cast %50 : vector<1xf32> to vector<1x1x1xf32>
      %52 = vector.extract %51[0, 0, 0] : f32 from vector<1x1x1xf32>
      %cst_38 = arith.constant 2.77258873 : f32
      %53 = arith.addf %cst_38, %52 : f32
      %54 = vector.extract_strided_slice %34 {offsets = [0, 16], sizes = [1, 16], strides = [1, 1]} : vector<1x32xf32> to vector<1x16xf32>
      %55 = vector.shape_cast %54 : vector<1x16xf32> to vector<1x1x16xf32>
      %cst_39 = arith.constant dense<0.000000e+00> : vector<1xf32>
      %56 = vector.multi_reduction <add>, %55, %cst_39 [1, 2] : vector<1x1x16xf32> to vector<1xf32>
      %57 = vector.shape_cast %56 : vector<1xf32> to vector<1x1x1xf32>
      %58 = vector.extract %57[0, 0, 0] : f32 from vector<1x1x1xf32>
      %cst_40 = arith.constant 9.99999993E-9 : f32
      %59 = arith.addf %58, %cst_40 : f32
      %60 = vector.broadcast %59 : f32 to vector<1x16xf32>
      %61 = arith.divf %54, %60 : vector<1x16xf32>
      %cst_41 = arith.constant 9.99999993E-9 : f32
      %62 = vector.broadcast %cst_41 : f32 to vector<1x16xf32>
      %63 = arith.addf %61, %62 : vector<1x16xf32>
      %64 = math.log %63 : vector<1x16xf32>
      %65 = arith.mulf %61, %64 : vector<1x16xf32>
      %66 = vector.shape_cast %65 : vector<1x16xf32> to vector<1x1x16xf32>
      %cst_42 = arith.constant dense<0.000000e+00> : vector<1xf32>
      %67 = vector.multi_reduction <add>, %66, %cst_42 [1, 2] : vector<1x1x16xf32> to vector<1xf32>
      %68 = vector.shape_cast %67 : vector<1xf32> to vector<1x1x1xf32>
      %69 = vector.extract %68[0, 0, 0] : f32 from vector<1x1x1xf32>
      %cst_43 = arith.constant 2.77258873 : f32
      %70 = arith.addf %cst_43, %69 : f32
      %cst_44 = arith.constant 1.000000e-16 : f32
      %71 = vector.broadcast %cst_44 : f32 to vector<1x32xf32>
      %72 = arith.maximumf %35, %71 : vector<1x32xf32>
      %73 = math.rsqrt %72 : vector<1x32xf32>
      %cst_45 = arith.constant 3.1622777 : f32
      %74 = vector.broadcast %cst_45 : f32 to vector<1x32xf32>
      %75 = arith.mulf %73, %74 : vector<1x32xf32>
      %76 = vector.broadcast %75 : vector<1x32xf32> to vector<32x32xf32>
      %77 = arith.mulf %33, %76 : vector<32x32xf32>
      %78 = tpu.transpose %77, [1, 0] : vector<32x32xf32> -> vector<32x32xf32>
      %79 = vector.broadcast %75 : vector<1x32xf32> to vector<32x32xf32>
      %80 = arith.mulf %78, %79 : vector<32x32xf32>
      %81 = arith.mulf %35, %75 : vector<1x32xf32>
      %82 = arith.mulf %81, %75 : vector<1x32xf32>
      %83 = vector.extract_strided_slice %75 {offsets = [0, 0], sizes = [1, 16], strides = [1, 1]} : vector<1x32xf32> to vector<1x16xf32>
      %84 = arith.mulf %36, %83 : vector<1x16xf32>
      %85 = vector.extract_strided_slice %75 {offsets = [0, 16], sizes = [1, 16], strides = [1, 1]} : vector<1x32xf32> to vector<1x16xf32>
      %86 = arith.mulf %84, %85 : vector<1x16xf32>
      %87 = tpu.concatenate %86, %86 in 1 : vector<1x16xf32>, vector<1x16xf32> -> vector<1x32xf32>
      %cst_46 = arith.constant dense<0xFF800000> : vector<32xf32>
      %88 = vector.multi_reduction <maximumf>, %80, %cst_46 [0] : vector<32x32xf32> to vector<32xf32>
      %89 = vector.shape_cast %88 : vector<32xf32> to vector<1x32xf32>
      %90 = vector.broadcast %89 : vector<1x32xf32> to vector<32x32xf32>
      %91 = arith.subf %80, %90 : vector<32x32xf32>
      %92 = math.exp %91 : vector<32x32xf32>
      %cst_47 = arith.constant dense<0.000000e+00> : vector<32xf32>
      %93 = vector.multi_reduction <add>, %92, %cst_47 [0] : vector<32x32xf32> to vector<32xf32>
      %94 = vector.shape_cast %93 : vector<32xf32> to vector<1x32xf32>
      %95 = arith.subf %82, %89 : vector<1x32xf32>
      %96 = math.exp %95 : vector<1x32xf32>
      %97 = arith.subf %94, %96 : vector<1x32xf32>
      %cst_48 = arith.constant 0.000000e+00 : f32
      %98 = vector.broadcast %cst_48 : f32 to vector<1x32xf32>
      %99 = arith.maximumf %97, %98 : vector<1x32xf32>
      %100 = arith.subf %87, %89 : vector<1x32xf32>
      %101 = math.exp %100 : vector<1x32xf32>
      %102 = arith.addf %99, %101 : vector<1x32xf32>
      %103 = math.log %102 : vector<1x32xf32>
      %104 = arith.addf %89, %103 : vector<1x32xf32>
      %105 = vector.shape_cast %104 : vector<1x32xf32> to vector<1x1x32xf32>
      %cst_49 = arith.constant dense<0.000000e+00> : vector<1xf32>
      %106 = vector.multi_reduction <add>, %105, %cst_49 [1, 2] : vector<1x1x32xf32> to vector<1xf32>
      %107 = vector.shape_cast %106 : vector<1xf32> to vector<1x1x1xf32>
      %108 = vector.extract %107[0, 0, 0] : f32 from vector<1x1x1xf32>
      %109 = vector.shape_cast %87 : vector<1x32xf32> to vector<1x1x32xf32>
      %cst_50 = arith.constant dense<0.000000e+00> : vector<1xf32>
      %110 = vector.multi_reduction <add>, %109, %cst_50 [1, 2] : vector<1x1x32xf32> to vector<1xf32>
      %111 = vector.shape_cast %110 : vector<1xf32> to vector<1x1x1xf32>
      %112 = vector.extract %111[0, 0, 0] : f32 from vector<1x1x1xf32>
      %113 = arith.subf %108, %112 : f32
      %cst_51 = arith.constant 3.200000e+01 : f32
      %114 = arith.divf %113, %cst_51 : f32
      %115 = arith.addf %114, %53 : f32
      %116 = arith.addf %115, %70 : f32
      %c0_52 = arith.constant 0 : index
      %c0_53 = arith.constant 0 : index
      %117 = memref.load %arg3[%c0_52, %c0_53] : memref<1x1xf32, #tpu.memory_space<smem>>
      memref.store %116, %arg3[%c0_52, %c0_53] : memref<1x1xf32, #tpu.memory_space<smem>>
    } else {
    }
    return
  }
  func.func @transform_0(%arg0: i32) -> (i32, i32) {
    %c0_i32 = arith.constant 0 : i32
    %c0_i32_0 = arith.constant 0 : i32
    return %arg0, %c0_i32 : i32, i32
  }
  func.func @transform_1(%arg0: i32) -> (i32, i32) {
    %c0_i32 = arith.constant 0 : i32
    %c0_i32_0 = arith.constant 0 : i32
    return %arg0, %c0_i32 : i32, i32
  }
  func.func @transform_2(%arg0: i32) -> (i32, i32) {
    %c0_i32 = arith.constant 0 : i32
    %c0_i32_0 = arith.constant 0 : i32
    %c0_i32_1 = arith.constant 0 : i32
    return %c0_i32, %c0_i32_0 : i32, i32
  }
}

</mosaic_0001>

<llo_original>
// kernel: tpu_custom_call.1
$region0: #{tpu_custom_call.1}
  #allocation0 [shape = 'u32[]', space=smem, size = 0x4, offset = 0x4, fixed_abs, tag = 'smem constant byte address 0x4 - core index']
  #allocation1 [shape = 'u32[144,128]{1,0:T(1,128)}', space=vmem, size = 0x12000, scoped, tag = 'internal scratch']
  #allocation2 [shape = 'f32[32,32]{1,0:T(8,128)}', space=vmem, size = 0x4000, scoped, tag = 'scratch operand']
  #allocation3 [shape = 'f32[1,32]{1,0:T(1,128)}', space=vmem, size = 0x200, scoped, tag = 'scratch operand']
  #allocation4 [shape = 'f32[1,32]{1,0:T(1,128)}', space=vmem, size = 0x200, scoped, tag = 'scratch operand']
  #allocation5 [shape = 'f32[1,16]{1,0:T(1,128)}', space=vmem, size = 0x200, scoped, tag = 'scratch operand']
  %s0 = inlined_call_operand.hbm [shape: f32[8,16], index: 0, kind: input, shape index: {}]
  %s1 = inlined_call_operand.hbm [shape: f32[8,16], index: 1, kind: input, shape index: {}]
  %s2 = inlined_call_operand.hbm [shape: f32[1,1], index: 2, kind: output, shape index: {}]
  %s3 = sld [smem:[#allocation0]]
  $region34: #{tpu_custom_call.1} parent=0
    _
  %s5 = ssub.s32 1, %s3
  %s6 = scalar_select 0, %s5, %s3
  $region1: #{tpu_custom_call.1} parent=0
    #allocation6 [shape = 'u8[4096]{0}', space=vmem, size = 0x1000, scoped, tag = 'input window, operand 0, single buffered']
    #allocation7 [shape = 's32[1]{0}', space=sflag, size = 0x4, scoped, tag = 'scoped memory for tpu_custom_call.1']
    #allocation8 [shape = 's32[1]{0}', space=sflag, size = 0x4, scoped, tag = 'scoped memory for tpu_custom_call.1']
    #allocation9 [shape = 'u8[4096]{0}', space=vmem, size = 0x1000, scoped, tag = 'input window, operand 1, single buffered']
    #allocation10 [shape = 's32[1]{0}', space=sflag, size = 0x4, scoped, tag = 'scoped memory for tpu_custom_call.1']
    #allocation11 [shape = 'u8[512]{0}', space=smem, size = 0x200, scoped, tag = 'output window, operand 0, single buffered']
    %7 = vsyncpa [#allocation7], 0
    %8 = vsyncpa [#allocation10], 0
    %9 = vsyncpa [#allocation8], 0
    // Predicated region
    $region2: #{tpu_custom_call.1} parent=1 // pred_check
      _
    $region3: #{tpu_custom_call.1} parent=1 // pred_check_branch
      %11 = sbr.rel (0) target = $region5
    $region4: #{tpu_custom_call.1} parent=1 // pred_region
      %s13 = ssub.s32 128, 128
      %14 = vsyncadd [#allocation7], %s13
      %s16 = sshll.u32 [#allocation6], 4
      %s17 = int_to_ptr.vmem [resolvable:$true] %s16
      %19 = dma.hbm_to_vmem [thread:$0]  %s0, 128, %s17, [#allocation7]
    $region5: #{tpu_custom_call.1} parent=1 // pred_fallthru
      _
    // Predicated region
    $region6: #{tpu_custom_call.1} parent=1 // pred_check
      _
    $region7: #{tpu_custom_call.1} parent=1 // pred_check_branch
      %21 = sbr.rel (0) target = $region9
    $region8: #{tpu_custom_call.1} parent=1 // pred_region
      %s23 = ssub.s32 128, 128
      %24 = vsyncadd [#allocation10], %s23
      %s26 = sshll.u32 [#allocation9], 4
      %s27 = int_to_ptr.vmem [resolvable:$true] %s26
      %29 = dma.hbm_to_vmem [thread:$0]  %s1, 128, %s27, [#allocation10]
    $region9: #{tpu_custom_call.1} parent=1 // pred_fallthru
      _
    // Predicated region
    $region10: #{tpu_custom_call.1} parent=1 // pred_check
      _
    $region11: #{tpu_custom_call.1} parent=1 // pred_check_branch
      %31 = sbr.rel (0) target = $region13
    $region12: #{tpu_custom_call.1} parent=1 // pred_region
      %32 = dma.done [#allocation7], 128
    $region13: #{tpu_custom_call.1} parent=1 // pred_fallthru
      _
    // Predicated region
    $region14: #{tpu_custom_call.1} parent=1 // pred_check
      _
    $region15: #{tpu_custom_call.1} parent=1 // pred_check_branch
      %34 = sbr.rel (0) target = $region17
    $region16: #{tpu_custom_call.1} parent=1 // pred_region
      %35 = dma.done [#allocation10], 128
    $region17: #{tpu_custom_call.1} parent=1 // pred_fallthru
      _
    %p36 = scmp.eq.s32.totalorder 0, 0
    // Predicated region
    $region18: #{tpu_custom_call.1} parent=1 // pred_check
      %p37 = pneg %p36
    $region19: #{tpu_custom_call.1} parent=1 // pred_check_branch
      %39 = sbr.rel (%p37) target = $region21
    $region20: #{tpu_custom_call.1} parent=1 // pred_region
      %vm40 = vcmask 261120
      %41 = vst.msk [vmem:[#allocation2] sm:$0xff] %vm40, 0.0
      %42 = vst.msk [vmem:[#allocation2 + $0x8] sm:$0xff] %vm40, 0.0
      %43 = vst.msk [vmem:[#allocation2 + $0x10] sm:$0xff] %vm40, 0.0
      %44 = vst.msk [vmem:[#allocation2 + $0x18] sm:$0xff] %vm40, 0.0
      %vm45 = vcmask 253952
      %46 = vst.msk [vmem:[#allocation3] sm:$0x1] %vm45, 0.0
      %47 = vst.msk [vmem:[#allocation4] sm:$0x1] %vm45, 0.0
      %vm48 = vcmask 122880
      %49 = vst.msk [vmem:[#allocation5] sm:$0x1] %vm48, 0.0
    $region21: #{tpu_custom_call.1} parent=1 // pred_fallthru
      _
    %v50 = vld [vmem:[#allocation6] sm:$0xff]
    %v51 = vld [vmem:[#allocation9] sm:$0xff]
    %v52 = vld [vmem:[#allocation3] sm:$0x1]
    %vm53 = vcmask 130048
    %v54 = vsel %vm53, %v50, 0.0
    %v55 = vrot.slane %v54, 4
    %v56 = vadd.f32 %v54, %v55
    %v57 = vrot.slane %v56, 2
    %v58 = vadd.f32 %v56, %v57
    %v59 = vrot.slane %v58, 1
    %v60 = vadd.f32 %v58, %v59
    %v61 = vsel %vm53, %v51, 0.0
    %v62 = vrot.slane %v61, 4
    %v63 = vadd.f32 %v61, %v62
    %v64 = vrot.slane %v63, 2
    %v65 = vadd.f32 %v63, %v64
    %v66 = vrot.slane %v65, 1
    %v67 = vadd.f32 %v65, %v66
    %69 = vrot.lane.b32.xlu0 %v67, 16
    %v70 = vpop.permute.xlu0 %69
    %v72 = vsel %vm53, %v60, %v70
    %v73 = vadd.f32 %v52, %v72
    %vm74 = vcmask 253952
    %75 = vst.msk [vmem:[#allocation3] sm:$0x1] %vm74, %v73
    %v76 = vld [vmem:[#allocation5] sm:$0x1]
    %v77 = vmul.f32 %v50, %v51
    %v78 = vsel %vm53, %v77, 0.0
    %v79 = vrot.slane %v78, 4
    %v80 = vadd.f32 %v78, %v79
    %v81 = vrot.slane %v80, 2
    %v82 = vadd.f32 %v80, %v81
    %v83 = vrot.slane %v82, 1
    %v84 = vadd.f32 %v82, %v83
    %v85 = vadd.f32 %v76, %v84
    %vm86 = vcmask 122880
    %87 = vst.msk [vmem:[#allocation5] sm:$0x1] %vm86, %v85
    %89 = vrot.lane.b32.xlu0 %v51, 16
    %v90 = vpop.permute.xlu0 %89
    %v92 = vsel %vm53, %v50, %v90
    %v93 = vld [vmem:[#allocation2] sm:$0xff]
    %v94 = vld [vmem:[#allocation2 + $0x8] sm:$0xff]
    %v95 = vld [vmem:[#allocation2 + $0x10] sm:$0xff]
    %v96 = vld [vmem:[#allocation2 + $0x18] sm:$0xff]
    %97 = vxpose.xlu0.b32.start [1/16] %v92, 128
    %98 = vxpose.xlu0.b32.cont [2/16] 0.0, 128
    %99 = vxpose.xlu0.b32.cont [3/16] 0.0, 128
    %100 = vxpose.xlu0.b32.cont [4/16] 0.0, 128
    %101 = vxpose.xlu0.b32.cont [5/16] 0.0, 128
    %102 = vxpose.xlu0.b32.cont [6/16] 0.0, 128
    %103 = vxpose.xlu0.b32.cont [7/16] 0.0, 128
    %104 = vxpose.xlu0.b32.cont [8/16] 0.0, 128
    %105 = vxpose.xlu0.b32.cont [9/16] 0.0, 128
    %106 = vxpose.xlu0.b32.cont [10/16] 0.0, 128
    %107 = vxpose.xlu0.b32.cont [11/16] 0.0, 128
    %108 = vxpose.xlu0.b32.cont [12/16] 0.0, 128
    %109 = vxpose.xlu0.b32.cont [13/16] 0.0, 128
    %110 = vxpose.xlu0.b32.cont [14/16] 0.0, 128
    %111 = vxpose.xlu0.b32.cont [15/16] 0.0, 128
    %112 = vxpose.xlu0.b32.end [16/16] 0.0, 128
    %v113 = vpop.trf.xlu0
    %v114 = vpop.trf.xlu0
    %v115 = vpop.trf.xlu0
    %v116 = vpop.trf.xlu0
    %v117 = vpop.trf.xlu0
    %v118 = vpop.trf.xlu0
    %v119 = vpop.trf.xlu0
    %v120 = vpop.trf.xlu0
    %v121 = vpop.trf.xlu0
    %v122 = vpop.trf.xlu0
    %v123 = vpop.trf.xlu0
    %v124 = vpop.trf.xlu0
    %v125 = vpop.trf.xlu0
    %v126 = vpop.trf.xlu0
    %v127 = vpop.trf.xlu0
    %v128 = vpop.trf.xlu0
    %vm129 = vcmask 64512
    %v131 = vsel %vm129, %v113, 0
    %v134 = vsel %vm129, %v114, 0
    %v137 = vsel %vm129, %v115, 0
    %v140 = vsel %vm129, %v116, 0
    %142 = vmatprep.subr.mxu0 0.0
    %143 = vmatpush1.msra.mxu0 %v92
    %144 = vmatprep.subr.mxu0 0.0
    %145 = vmatpush1.msra.mxu0 0.0
    %146 = vmatprep.subr.mxu0 0.0
    %147 = vmatpush1.msra.mxu0 0.0
    %148 = vmatprep.subr.mxu0 0.0
    %149 = vmatpush1.msra.mxu0 0.0
    %150 = vmatprep.subr.mxu0 0.0
    %151 = vmatpush1.msra.mxu0 0.0
    %152 = vmatprep.subr.mxu0 0.0
    %153 = vmatpush1.msra.mxu0 0.0
    %154 = vmatprep.subr.mxu0 0.0
    %155 = vmatpush1.msra.mxu0 0.0
    %156 = vmatprep.subr.mxu0 0.0
    %157 = vmatpush1.msra.mxu0 0.0
    %158 = vmatprep.subr.mxu0 0.0
    %159 = vmatpush1.msra.mxu0 0.0
    %160 = vmatprep.subr.mxu0 0.0
    %161 = vmatpush1.msra.mxu0 0.0
    %162 = vmatprep.subr.mxu0 0.0
    %163 = vmatpush1.msra.mxu0 0.0
    %164 = vmatprep.subr.mxu0 0.0
    %165 = vmatpush1.msra.mxu0 0.0
    %166 = vmatprep.subr.mxu0 0.0
    %167 = vmatpush1.msra.mxu0 0.0
    %168 = vmatprep.subr.mxu0 0.0
    %169 = vmatpush1.msra.mxu0 0.0
    %170 = vmatprep.subr.mxu0 0.0
    %171 = vmatpush1.msra.mxu0 0.0
    %172 = vmatprep.subr.mxu0 0.0
    %173 = vmatpush1.msra.mxu0 0.0
    %174 = vmatprep.subr.mxu0 0.0
    %175 = vmatpush1.msra.mxu0 0.0
    %176 = vmatprep.subr.mxu0 0.0
    %177 = vmatpush1.msra.mxu0 0.0
    %178 = vmatprep.subr.mxu0 0.0
    %179 = vmatpush1.msra.mxu0 0.0
    %180 = vmatprep.subr.mxu0 0.0
    %181 = vmatpush1.msra.mxu0 0.0
    %182 = vmatprep.subr.mxu0 0.0
    %183 = vmatpush1.msra.mxu0 0.0
    %184 = vmatprep.subr.mxu0 0.0
    %185 = vmatpush1.msra.mxu0 0.0
    %186 = vmatprep.subr.mxu0 0.0
    %187 = vmatpush1.msra.mxu0 0.0
    %188 = vmatprep.subr.mxu0 0.0
    %189 = vmatpush1.msra.mxu0 0.0
    %190 = vmatprep.subr.mxu0 0.0
    %191 = vmatpush1.msra.mxu0 0.0
    %192 = vmatprep.subr.mxu0 0.0
    %193 = vmatpush1.msra.mxu0 0.0
    %194 = vmatprep.subr.mxu0 0.0
    %195 = vmatpush1.msra.mxu0 0.0
    %196 = vmatprep.subr.mxu0 0.0
    %197 = vmatpush1.msra.mxu0 0.0
    %198 = vmatprep.subr.mxu0 0.0
    %199 = vmatpush1.msra.mxu0 0.0
    %200 = vmatprep.subr.mxu0 0.0
    %201 = vmatpush1.msra.mxu0 0.0
    %202 = vmatprep.subr.mxu0 0.0
    %203 = vmatpush1.msra.mxu0 0.0
    %204 = vmatprep.subr.mxu0 0.0
    %205 = vmatpush1.msra.mxu0 0.0
    %206 = vmatprep.mubr.f32.mxu0 0.0
    %207 = vmatmul.mubr.f32.gmra.mrb[0].mxu0 %v131
    %v208 = vpop.f32.mrb[0].mxu0
    %v209 = vadd.f32 0.0, %v208
    %v210 = vpop.f32.mrb[0].mxu0
    %211 = vmatprep.mubr.f32.mxu0 0.0
    %212 = vmatmul.mubr.f32.gmra.mrb[0].mxu0 %v134
    %v213 = vpop.f32.mrb[0].mxu0
    %v214 = vadd.f32 0.0, %v213
    %v215 = vpop.f32.mrb[0].mxu0
    %216 = vmatprep.mubr.f32.mxu0 0.0
    %217 = vmatmul.mubr.f32.gmra.mrb[0].mxu0 %v137
    %v218 = vpop.f32.mrb[0].mxu0
    %v219 = vadd.f32 0.0, %v218
    %v220 = vpop.f32.mrb[0].mxu0
    %221 = vmatprep.mubr.f32.mxu0 0.0
    %222 = vmatmul.mubr.f32.gmra.mrb[0].mxu0 %v140
    %v223 = vpop.f32.mrb[0].mxu0
    %v224 = vadd.f32 0.0, %v223
    %v225 = vpop.f32.mrb[0].mxu0
    %226 = vdwg.mxu0
    %v227 = vadd.f32 %v93, %v209
    %v228 = vadd.f32 %v94, %v214
    %v229 = vadd.f32 %v95, %v219
    %v230 = vadd.f32 %v96, %v224
    %vm231 = vcmask 261120
    %232 = vst.msk [vmem:[#allocation2] sm:$0xff] %vm231, %v227
    %233 = vst.msk [vmem:[#allocation2 + $0x8] sm:$0xff] %vm231, %v228
    %234 = vst.msk [vmem:[#allocation2 + $0x10] sm:$0xff] %vm231, %v229
    %235 = vst.msk [vmem:[#allocation2 + $0x18] sm:$0xff] %vm231, %v230
    %v236 = vld [vmem:[#allocation4] sm:$0x1]
    %v237 = vmul.f32 %v92, %v92
    %v238 = vsel %vm231, %v237, 0.0
    %v239 = vrot.slane %v238, 4
    %v240 = vadd.f32 %v238, %v239
    %v241 = vrot.slane %v240, 2
    %v242 = vadd.f32 %v240, %v241
    %v243 = vrot.slane %v242, 1
    %v244 = vadd.f32 %v242, %v243
    %v245 = vadd.f32 %v236, %v244
    %246 = vst.msk [vmem:[#allocation4] sm:$0x1] %vm74, %v245
    // Predicated region
    $region22: #{tpu_custom_call.1} parent=1 // pred_check
      %p247 = pneg %p36
    $region23: #{tpu_custom_call.1} parent=1 // pred_check_branch
      %249 = sbr.rel (%p247) target = $region25
    $region24: #{tpu_custom_call.1} parent=1 // pred_region
      %v250 = vld [vmem:[#allocation2] sm:$0xff]
      %v251 = vld [vmem:[#allocation2 + $0x8] sm:$0xff]
      %v252 = vld [vmem:[#allocation2 + $0x10] sm:$0xff]
      %v253 = vld [vmem:[#allocation2 + $0x18] sm:$0xff]
      %v254 = vld [vmem:[#allocation3] sm:$0x1]
      %v255 = vld [vmem:[#allocation4] sm:$0x1]
      %v256 = vld [vmem:[#allocation5] sm:$0x1]
      %v257 = vsel %vm86, %v254, 0.0
      %258 = vadd.xlane.f32.xlu0 %v257
      %v259 = vpop.xlane.xlu0 %258
      %v260 = vrot.slane %v259, 4
      %v261 = vadd.f32 %v259, %v260
      %v262 = vrot.slane %v261, 2
      %v263 = vadd.f32 %v261, %v262
      %v264 = vrot.slane %v263, 1
      %v265 = vadd.f32 %v263, %v264
      %s266 = vtos %v265
      %s267 = sadd.f32 %s266, 1e-08
      %v268 = vstv %s267
      %v269 = vrcp.pop %v268
      %v270 = vmul.f32 %v254, %v269
      %v271 = vadd.f32 %v270, 1e-08
      %v272 = vlog2.pop %v271
      %v273 = vmul.f32 %v272, 0.6931472
      %v274 = vmul.f32 %v270, %v273
      %v275 = vsel %vm86, %v274, 0.0
      %276 = vadd.xlane.f32.xlu0 %v275
      %v277 = vpop.xlane.xlu0 %276
      %v278 = vrot.slane %v277, 4
      %v279 = vadd.f32 %v277, %v278
      %v280 = vrot.slane %v279, 2
      %v281 = vadd.f32 %v279, %v280
      %v282 = vrot.slane %v281, 1
      %v283 = vadd.f32 %v281, %v282
      %s284 = vtos %v283
      %s285 = sadd.f32 %s284, 2.7725887
      %v287 = vlaneseq
      %v288 = vshrl.u32 %v287, 7
      %v289 = vsub.s32 0, %v288
      %v290 = vrot.slane %v254, %v289
      %291 = vrot.lane.b32.xlu0 %v290, 112
      %v292 = vpop.permute.xlu0 %291
      %v294 = vsel %vm86, %v292, 0.0
      %295 = vadd.xlane.f32.xlu0 %v294
      %v296 = vpop.xlane.xlu0 %295
      %v297 = vrot.slane %v296, 4
      %v298 = vadd.f32 %v296, %v297
      %v299 = vrot.slane %v298, 2
      %v300 = vadd.f32 %v298, %v299
      %v301 = vrot.slane %v300, 1
      %v302 = vadd.f32 %v300, %v301
      %s303 = vtos %v302
      %s304 = sadd.f32 %s303, 1e-08
      %v305 = vstv %s304
      %v306 = vrcp.pop %v305
      %v307 = vmul.f32 %v254, %v306
      %v308 = vadd.f32 %v307, 1e-08
      %v309 = vlog2.pop %v308
      %v310 = vmul.f32 %v309, 0.6931472
      %v311 = vmul.f32 %v307, %v310
      %v313 = vlaneseq
      %v314 = vshrl.u32 %v313, 7
      %v315 = vsub.s32 0, %v314
      %v316 = vrot.slane %v311, %v315
      %317 = vrot.lane.b32.xlu0 %v316, 112
      %v318 = vpop.permute.xlu0 %317
      %v320 = vsel %vm86, %v318, 0.0
      %321 = vadd.xlane.f32.xlu0 %v320
      %v322 = vpop.xlane.xlu0 %321
      %v323 = vrot.slane %v322, 4
      %v324 = vadd.f32 %v322, %v323
      %v325 = vrot.slane %v324, 2
      %v326 = vadd.f32 %v324, %v325
      %v327 = vrot.slane %v326, 1
      %v328 = vadd.f32 %v326, %v327
      %s329 = vtos %v328
      %s330 = sadd.f32 %s329, 2.7725887
      %v331 = vmax.f32 %v255, 1e-16
      %v332 = vrsqrt.pop %v331
      %v333 = vmul.f32 %v332, 3.1622777
      %v335 = vlaneseq
      %v336 = vshrl.u32 %v335, 7
      %v337 = vsub.s32 0, %v336
      %v338 = vrot.slane %v333, %v337
      %v340 = vmul.f32 %v250, %v338
      %v341 = vmul.f32 %v251, %v338
      %v342 = vmul.f32 %v252, %v338
      %v343 = vmul.f32 %v253, %v338
      %344 = vxpose.xlu0.b32.start [1/16] %v340, 128
      %345 = vxpose.xlu0.b32.cont [2/16] %v341, 128
      %346 = vxpose.xlu0.b32.cont [3/16] %v342, 128
      %347 = vxpose.xlu0.b32.cont [4/16] %v343, 128
      %348 = vxpose.xlu0.b32.cont [5/16] 0.0, 128
      %349 = vxpose.xlu0.b32.cont [6/16] 0.0, 128
      %350 = vxpose.xlu0.b32.cont [7/16] 0.0, 128
      %351 = vxpose.xlu0.b32.cont [8/16] 0.0, 128
      %352 = vxpose.xlu0.b32.cont [9/16] 0.0, 128
      %353 = vxpose.xlu0.b32.cont [10/16] 0.0, 128
      %354 = vxpose.xlu0.b32.cont [11/16] 0.0, 128
      %355 = vxpose.xlu0.b32.cont [12/16] 0.0, 128
      %356 = vxpose.xlu0.b32.cont [13/16] 0.0, 128
      %357 = vxpose.xlu0.b32.cont [14/16] 0.0, 128
      %358 = vxpose.xlu0.b32.cont [15/16] 0.0, 128
      %359 = vxpose.xlu0.b32.end [16/16] 0.0, 128
      %v360 = vpop.trf.xlu0
      %v361 = vpop.trf.xlu0
      %v362 = vpop.trf.xlu0
      %v363 = vpop.trf.xlu0
      %v364 = vpop.trf.xlu0
      %v365 = vpop.trf.xlu0
      %v366 = vpop.trf.xlu0
      %v367 = vpop.trf.xlu0
      %v368 = vpop.trf.xlu0
      %v369 = vpop.trf.xlu0
      %v370 = vpop.trf.xlu0
      %v371 = vpop.trf.xlu0
      %v372 = vpop.trf.xlu0
      %v373 = vpop.trf.xlu0
      %v374 = vpop.trf.xlu0
      %v375 = vpop.trf.xlu0
      %v376 = vmul.f32 %v360, %v338
      %v377 = vmul.f32 %v361, %v338
      %v378 = vmul.f32 %v362, %v338
      %v379 = vmul.f32 %v363, %v338
      %v380 = vmul.f32 %v255, %v333
      %v381 = vmul.f32 %v380, %v333
      %v382 = vmul.f32 %v256, %v333
      %383 = vrot.lane.b32.xlu0 %v333, 112
      %v384 = vpop.permute.xlu0 %383
      %v386 = vmul.f32 %v382, %v384
      %v388 = vlaneseq
      %v389 = vshrl.u32 %v388, 7
      %v390 = vsub.s32 0, %v389
      %v391 = vrot.slane %v386, %v390
      %392 = vrot.lane.b32.xlu0 %v391, 16
      %v393 = vpop.permute.xlu0 %392
      %v395 = vsel %vm53, %v386, %v393
      %v396 = vsel %vm231, %v376, -inf
      %v397 = vsel %vm231, %v377, -inf
      %v398 = vsel %vm231, %v378, -inf
      %v399 = vsel %vm231, %v379, -inf
      %v400 = vmax.f32 %v396, %v397
      %v401 = vmax.f32 %v398, %v399
      %v402 = vmax.f32 %v400, %v401
      %v403 = vrot.slane %v402, 4
      %v404 = vmax.f32 %v402, %v403
      %v405 = vrot.slane %v404, 2
      %v406 = vmax.f32 %v404, %v405
      %v407 = vrot.slane %v406, 1
      %v408 = vmax.f32 %v406, %v407
      %v409 = vsub.f32 %v376, %v408
      %v410 = vsub.f32 %v377, %v408
      %v411 = vsub.f32 %v378, %v408
      %v412 = vsub.f32 %v379, %v408
      %v413 = vmul.f32 %v409, 1.442695
      %v414 = vpow.pop %v413
      %v415 = vmul.f32 %v410, 1.442695
      %v416 = vpow.pop %v415
      %v417 = vmul.f32 %v411, 1.442695
      %v418 = vpow.pop %v417
      %v419 = vmul.f32 %v412, 1.442695
      %v420 = vpow.pop %v419
      %v421 = vsel %vm231, %v414, 0.0
      %v422 = vsel %vm231, %v416, 0.0
      %v423 = vadd.f32 %v421, %v422
      %v424 = vsel %vm231, %v418, 0.0
      %v425 = vadd.f32 %v423, %v424
      %v426 = vsel %vm231, %v420, 0.0
      %v427 = vadd.f32 %v425, %v426
      %v428 = vrot.slane %v427, 4
      %v429 = vadd.f32 %v427, %v428
      %v430 = vrot.slane %v429, 2
      %v431 = vadd.f32 %v429, %v430
      %v432 = vrot.slane %v431, 1
      %v433 = vadd.f32 %v431, %v432
      %v434 = vsub.f32 %v381, %v408
      %v435 = vmul.f32 %v434, 1.442695
      %v436 = vpow.pop %v435
      %v437 = vsub.f32 %v433, %v436
      %v438 = vmax.f32 %v437, 0.0
      %v439 = vsub.f32 %v395, %v408
      %v440 = vmul.f32 %v439, 1.442695
      %v441 = vpow.pop %v440
      %v442 = vadd.f32 %v438, %v441
      %v443 = vlog2.pop %v442
      %v444 = vmul.f32 %v443, 0.6931472
      %v445 = vadd.f32 %v408, %v444
      %v446 = vsel %vm74, %v445, 0.0
      %447 = vadd.xlane.f32.xlu0 %v446
      %v448 = vpop.xlane.xlu0 %447
      %v449 = vrot.slane %v448, 4
      %v450 = vadd.f32 %v448, %v449
      %v451 = vrot.slane %v450, 2
      %v452 = vadd.f32 %v450, %v451
      %v453 = vrot.slane %v452, 1
      %v454 = vadd.f32 %v452, %v453
      %s455 = vtos %v454
      %v456 = vsel %vm74, %v395, 0.0
      %457 = vadd.xlane.f32.xlu0 %v456
      %v458 = vpop.xlane.xlu0 %457
      %v459 = vrot.slane %v458, 4
      %v460 = vadd.f32 %v458, %v459
      %v461 = vrot.slane %v460, 2
      %v462 = vadd.f32 %v460, %v461
      %v463 = vrot.slane %v462, 1
      %v464 = vadd.f32 %v462, %v463
      %s465 = vtos %v464
      %s466 = ssub.f32 %s455, %s465
      %v467 = vrcp.pop 32.0
      %s468 = vtos %v467
      %s469 = smul.f32 %s466, %s468
      %s470 = sadd.f32 %s469, %s285
      %s471 = sadd.f32 %s470, %s330
      %s472 = scalar_lea.smem [#allocation11], 0
      %473 = sst [smem:[%s472]] %s471
    $region25: #{tpu_custom_call.1} parent=1 // pred_fallthru
      _
    // Predicated region
    $region26: #{tpu_custom_call.1} parent=1 // pred_check
      _
    $region27: #{tpu_custom_call.1} parent=1 // pred_check_branch
      %475 = sbr.rel (0) target = $region29
    $region28: #{tpu_custom_call.1} parent=1 // pred_region
      %s477 = ssub.s32 16, 16
      %478 = vsyncadd [#allocation8], %s477
      %481 = dma.smem_to_hbm [#allocation11], 16, %s2, [#allocation8]
    $region29: #{tpu_custom_call.1} parent=1 // pred_fallthru
      _
    // Predicated region
    $region30: #{tpu_custom_call.1} parent=1 // pred_check
      _
    $region31: #{tpu_custom_call.1} parent=1 // pred_check_branch
      %483 = sbr.rel (0) target = $region33
    $region32: #{tpu_custom_call.1} parent=1 // pred_region
      %484 = dma.done [#allocation8], 16
    $region33: #{tpu_custom_call.1} parent=1 // pred_fallthru
      _
    %485 = sfence
    %486 = vsyncpa [#allocation7], 1
    %487 = vsyncpa [#allocation10], 1
    %488 = vsyncpa [#allocation8], 1

</llo_original>
